<compile_context>
chip_gen: v6e
topology: v6e:2x2x1
jax: 0.10.0
libtpu: 0.0.40
codegen_flags: <defaults>
</compile_context>

<pallas_src>
import jax
import jax.numpy as jnp
from jax.experimental import pallas as pl
from jax.experimental.pallas import tpu as pltpu


LANES = 128
MAX_TILE_ROWS = 1024  # 1024 x 128 f32 = 512 KiB per block


# ----------------------------- kernels ------------------------------------- #

def _sub_kernel(src_ref, dst_ref, out_ref):
    """norm=False path: relative coordinates only."""
    out_ref[...] = src_ref[...] - dst_ref[...]


def _fused_norm_kernel(src_ref, dst_ref, out_ref):
    """Single-tile path: sub + global abs-max + scale, all in one VMEM pass."""
    cart = (src_ref[...] - dst_ref[...]).astype(jnp.float32)
    m = jnp.max(jnp.abs(cart))
    inv = 1.0 / (2.0 * m)                       # one reciprocal, then broadcast-FMA
    out_ref[...] = (cart * inv + 0.5).astype(out_ref.dtype)


def _absmax_kernel(src_ref, dst_ref, max_ref):
    """Pass 1: running abs-max of (src - dst) accumulated across the grid."""
    i = pl.program_id(0)

    @pl.when(i == 0)
    def _():
        max_ref[...] = jnp.zeros_like(max_ref)  # abs-max >= 0, so 0 is a safe init

    tmax = jnp.max(jnp.abs(src_ref[...] - dst_ref[...]), keepdims=True)
    max_ref[...] = jnp.maximum(max_ref[...], tmax.astype(max_ref.dtype))


def _scale_kernel(inv_ref, src_ref, dst_ref, out_ref):
    """Pass 2: cart * (1/(2*max)) + 0.5 with the scalar held in SMEM."""
    cart = (src_ref[...] - dst_ref[...]).astype(jnp.float32)
    out_ref[...] = (cart * inv_ref[0] + 0.5).astype(out_ref.dtype)


def _make_fixed_scale_kernel(inv_const):
    """Static max_value: fold 1/(2*max_value) into a closure constant."""
    inv_const = float(inv_const)

    def kernel(src_ref, dst_ref, out_ref):
        cart = (src_ref[...] - dst_ref[...]).astype(jnp.float32)
        out_ref[...] = (cart * inv_const + 0.5).astype(out_ref.dtype)

    return kernel


# ----------------------------- wrappers ------------------------------------ #

def _slab_geometry(n_elems, tile_rows=None):
    """Rows of the padded lane-dense (rows, 128) slab and the tile size."""
    rows_needed = max(1, -(-n_elems // LANES))
    if tile_rows is None:
        if rows_needed <= MAX_TILE_ROWS:
            tile_rows = -(-rows_needed // 8) * 8
        else:
            tile_rows = MAX_TILE_ROWS
    tile_rows = max(8, -(-int(tile_rows) // 8) * 8)
    rows = -(-rows_needed // tile_rows) * tile_rows
    return rows, tile_rows


def _to_slab(a, rows):
    flat = a.reshape(-1)
    pad = rows * LANES - flat.shape[0]
    return jnp.pad(flat, (0, pad)).reshape(rows, LANES)


def _run_pallas_cart(pos_src, pos_dst, norm, max_value, tile_rows=None):
    E, D = pos_src.shape
    dtype = pos_src.dtype
    n_elems = E * D

    rows, tr = _slab_geometry(n_elems, tile_rows)
    num_tiles = rows // tr

    src_slab = _to_slab(pos_src, rows)
    dst_slab = _to_slab(pos_dst, rows)

    slab_spec = pl.BlockSpec((tr, LANES), lambda i: (i, 0))
    out_shape = jax.ShapeDtypeStruct((rows, LANES), dtype)
    parallel = pltpu.CompilerParams(dimension_semantics=("parallel",))
    arbitrary = pltpu.CompilerParams(dimension_semantics=("arbitrary",))

    if not norm:
        out_slab = pl.pallas_call(
            _sub_kernel,
            out_shape=out_shape,
            grid=(num_tiles,),
            in_specs=[slab_spec, slab_spec],
            out_specs=slab_spec,
            compiler_params=parallel,
        )(src_slab, dst_slab)

    elif max_value is not None:
        kernel = _make_fixed_scale_kernel(1.0 / (2.0 * float(max_value)))
        out_slab = pl.pallas_call(
            kernel,
            out_shape=out_shape,
            grid=(num_tiles,),
            in_specs=[slab_spec, slab_spec],
            out_specs=slab_spec,
            compiler_params=parallel,
        )(src_slab, dst_slab)

    elif num_tiles == 1:
        # whole problem fits in one tile: fuse sub + abs-max + scale in one pass
        out_slab = pl.pallas_call(
            _fused_norm_kernel,
            out_shape=out_shape,
            grid=(num_tiles,),
            in_specs=[slab_spec, slab_spec],
            out_specs=slab_spec,
            compiler_params=arbitrary,
        )(src_slab, dst_slab)

    else:
        # pass 1: global abs-max accumulated into a resident (1,1) output
        max_out = pl.pallas_call(
            _absmax_kernel,
            out_shape=jax.ShapeDtypeStruct((1, 1), jnp.float32),
            grid=(num_tiles,),
            in_specs=[slab_spec, slab_spec],
            out_specs=pl.BlockSpec((1, 1), lambda i: (0, 0)),
            compiler_params=arbitrary,
        )(src_slab, dst_slab)

        # one scalar reciprocal (matches torch's inf/nan behavior when max == 0)
        inv = jnp.reshape(0.5 / max_out[0, 0], (1,)).astype(jnp.float32)

        # pass 2: normalize; "parallel" lets v7x's two TensorCores split the tiles
        out_slab = pl.pallas_call(
            _scale_kernel,
            out_shape=out_shape,
            grid=(num_tiles,),
            in_specs=[
                pl.BlockSpec(memory_space=pltpu.MemorySpace.SMEM),
                slab_spec,
                slab_spec,
            ],
            out_specs=slab_spec,
            compiler_params=parallel,
        )(inv, src_slab, dst_slab)

    return out_slab.reshape(-1)[:n_elems].reshape(E, D)


def cartesian_forward(x, pos, edge_index, edge_attr=None,
                      norm=True, max_value=None, cat=True, tile_rows=None):
    """JAX/Pallas equivalent of Cartesian.forward on a pyg `Data` object."""
    if edge_index is None or edge_index.shape[1] == 0:
        # fallback branch of the wrapper module
        return jnp.zeros((0, 3), dtype=x.dtype)

    row = edge_index[0]
    col = edge_index[1]
    # TODO(synk): fuse this data-dependent row gather into the kernel (pos resident
    # in VMEM, indices streamed); arbitrary-index row gather has no clean
    # BlockSpec/index_map expression, so it stays as JAX glue feeding the kernel.
    pos_src = jnp.take(pos, row, axis=0)
    pos_dst = jnp.take(pos, col, axis=0)

    cart = _run_pallas_cart(pos_src, pos_dst, norm, max_value, tile_rows)

    if edge_attr is not None and cat:
        pseudo = edge_attr if edge_attr.ndim > 1 else edge_attr[:, None]
        return jnp.concatenate([pseudo, cart.astype(pseudo.dtype)], axis=-1)
    return cart


def _reference(pos, edge_index, norm=True, max_value=None):
    row, col = edge_index[0], edge_index[1]
    cart = pos[row] - pos[col]
    if norm and cart.size > 0:
        m = jnp.max(jnp.abs(cart)) if max_value is None else max_value
        cart = cart / (2.0 * m) + 0.5
    return cart


if __name__ == "__main__":
    key = jax.random.PRNGKey(0)
    k1, k2, k3, k4, k5 = jax.random.split(key, 5)

    # small default-args test (single fused tile)
    N, F, D, E = 16, 4, 3, 8
    x = jax.random.normal(k1, (N, F), dtype=jnp.float32)
    pos = jax.random.normal(k2, (N, D), dtype=jnp.float32)
    edge_index = jax.random.randint(k3, (2, E), 0, N, dtype=jnp.int32)

    edge_attr = jax.block_until_ready(cartesian_forward(x, pos, edge_index))
    ref = _reference(pos, edge_index)
    assert edge_attr.shape == (E, D), edge_attr.shape
    assert jnp.allclose(edge_attr, ref, atol=1e-6, rtol=1e-6), "mismatch (fused path)"

    # multi-tile test: tiny tile_rows forces the two-pass (abs-max + normalize) grid path
    N2, E2 = 64, 400
    pos2 = jax.random.normal(k4, (N2, D), dtype=jnp.float32)
    ei2 = jax.random.randint(k5, (2, E2), 0, N2, dtype=jnp.int32)
    x2 = jnp.zeros((N2, 1), dtype=jnp.float32)
    out2 = jax.block_until_ready(cartesian_forward(x2, pos2, ei2, tile_rows=8))
    ref2 = _reference(pos2, ei2)
    assert out2.shape == (E2, D), out2.shape
    assert jnp.allclose(out2, ref2, atol=1e-6, rtol=1e-6), "mismatch (two-pass path)"

    # fixed max_value + cat with an existing edge_attr
    old_attr = jnp.ones((E, 2), dtype=jnp.float32)
    out3 = jax.block_until_ready(
        cartesian_forward(x, pos, edge_index, edge_attr=old_attr, max_value=2.5))
    ref3 = jnp.concatenate([old_attr, _reference(pos, edge_index, max_value=2.5)], axis=-1)
    assert out3.shape == (E, D + 2), out3.shape
    assert jnp.allclose(out3, ref3, atol=1e-6, rtol=1e-6), "mismatch (fixed max path)"

    # norm=False path
    out4 = jax.block_until_ready(cartesian_forward(x, pos, edge_index, norm=False))
    assert jnp.allclose(out4, _reference(pos, edge_index, norm=False),
                        atol=1e-6, rtol=1e-6), "mismatch (raw path)"

    # empty-edge fallback branch
    empty_attr = cartesian_forward(x, pos, jnp.zeros((2, 0), dtype=jnp.int32))
    assert empty_attr.shape == (0, 3) and empty_attr.dtype == x.dtype

    print("KERNEL_OK")
</pallas_src>

<mosaic_0001>
module attributes {stable_mosaic.version = 11 : i64} {
  func.func @_fused_norm_kernel(%arg0: i32, %arg1: memref<8x128xf32, #tpu.memory_space<vmem>>, %arg2: memref<8x128xf32, #tpu.memory_space<vmem>>, %arg3: memref<8x128xf32, #tpu.memory_space<vmem>>) attributes {dimension_semantics = [#tpu.dimension_semantics<arbitrary>], iteration_bounds = array<i64: 1>, scalar_prefetch = 0 : i64, scratch_operands = 0 : i64, tpu.core_type = #tpu.core_type<tc>, window_params = [{transform_indices = @transform_0, window_bounds = array<i64: 8, 128>}, {transform_indices = @transform_1, window_bounds = array<i64: 8, 128>}, {transform_indices = @transform_2, window_bounds = array<i64: 8, 128>}]} {
    %c0 = arith.constant 0 : index
    %c0_0 = arith.constant 0 : index
    %0 = vector.load %arg1[%c0, %c0_0] : memref<8x128xf32, #tpu.memory_space<vmem>>, vector<8x128xf32>
    %c0_1 = arith.constant 0 : index
    %c0_2 = arith.constant 0 : index
    %1 = vector.load %arg2[%c0_1, %c0_2] : memref<8x128xf32, #tpu.memory_space<vmem>>, vector<8x128xf32>
    %2 = arith.subf %0, %1 : vector<8x128xf32>
    %3 = math.absf %2 : vector<8x128xf32>
    %4 = vector.shape_cast %3 : vector<8x128xf32> to vector<1x8x128xf32>
    %cst = arith.constant dense<0xFF800000> : vector<1xf32>
    %5 = vector.multi_reduction <maximumf>, %4, %cst [1, 2] : vector<1x8x128xf32> to vector<1xf32>
    %6 = vector.shape_cast %5 : vector<1xf32> to vector<1x1x1xf32>
    %7 = vector.extract %6[0, 0, 0] : f32 from vector<1x1x1xf32>
    %cst_3 = arith.constant 2.000000e+00 : f32
    %8 = arith.mulf %cst_3, %7 : f32
    %cst_4 = arith.constant 1.000000e+00 : f32
    %9 = arith.divf %cst_4, %8 : f32
    %10 = vector.broadcast %9 : f32 to vector<8x128xf32>
    %11 = arith.mulf %2, %10 : vector<8x128xf32>
    %cst_5 = arith.constant 5.000000e-01 : f32
    %12 = vector.broadcast %cst_5 : f32 to vector<8x128xf32>
    %13 = arith.addf %11, %12 : vector<8x128xf32>
    %c0_6 = arith.constant 0 : index
    %c0_7 = arith.constant 0 : index
    %14 = vector.load %arg3[%c0_6, %c0_7] : memref<8x128xf32, #tpu.memory_space<vmem>>, vector<8x128xf32>
    tpu.vector_store %arg3[%c0_6, %c0_7], %13 {strides = array<i32>} : memref<8x128xf32, #tpu.memory_space<vmem>>, vector<8x128xf32>,
    return
  }
  func.func @transform_0(%arg0: i32) -> (i32, i32) {
    %c0_i32 = arith.constant 0 : i32
    %c0_i32_0 = arith.constant 0 : i32
    return %arg0, %c0_i32 : i32, i32
  }
  func.func @transform_1(%arg0: i32) -> (i32, i32) {
    %c0_i32 = arith.constant 0 : i32
    %c0_i32_0 = arith.constant 0 : i32
    return %arg0, %c0_i32 : i32, i32
  }
  func.func @transform_2(%arg0: i32) -> (i32, i32) {
    %c0_i32 = arith.constant 0 : i32
    %c0_i32_0 = arith.constant 0 : i32
    return %arg0, %c0_i32 : i32, i32
  }
}

</mosaic_0001>

<llo_original>
// kernel: tpu_custom_call.1
$region0: #{tpu_custom_call.1}
  #allocation0 [shape = 'u32[]', space=smem, size = 0x4, offset = 0x4, fixed_abs, tag = 'smem constant byte address 0x4 - core index']
  #allocation1 [shape = 'u32[144,128]{1,0:T(1,128)}', space=vmem, size = 0x12000, scoped, tag = 'internal scratch']
  %s0 = inlined_call_operand.hbm [shape: f32[8,128], index: 0, kind: input, shape index: {}]
  %s1 = inlined_call_operand.hbm [shape: f32[8,128], index: 1, kind: input, shape index: {}]
  %s2 = inlined_call_operand.hbm [shape: f32[8,128], index: 2, kind: output, shape index: {}]
  %s3 = sld [smem:[#allocation0]]
  $region26: #{tpu_custom_call.1} parent=0
    _
  %s5 = ssub.s32 1, %s3
  %s6 = scalar_select 0, %s5, %s3
  $region1: #{tpu_custom_call.1} parent=0
    #allocation2 [shape = 'u8[4096]{0}', space=vmem, size = 0x1000, scoped, tag = 'input window, operand 0, single buffered']
    #allocation3 [shape = 's32[1]{0}', space=sflag, size = 0x4, scoped, tag = 'scoped memory for tpu_custom_call.1']
    #allocation4 [shape = 's32[1]{0}', space=sflag, size = 0x4, scoped, tag = 'scoped memory for tpu_custom_call.1']
    #allocation5 [shape = 'u8[4096]{0}', space=vmem, size = 0x1000, scoped, tag = 'input window, operand 1, single buffered']
    #allocation6 [shape = 's32[1]{0}', space=sflag, size = 0x4, scoped, tag = 'scoped memory for tpu_custom_call.1']
    #allocation7 [shape = 'u8[4096]{0}', space=vmem, size = 0x1000, scoped, tag = 'output window, operand 0, single buffered']
    %7 = vsyncpa [#allocation3], 0
    %8 = vsyncpa [#allocation6], 0
    %9 = vsyncpa [#allocation4], 0
    // Predicated region
    $region2: #{tpu_custom_call.1} parent=1 // pred_check
      _
    $region3: #{tpu_custom_call.1} parent=1 // pred_check_branch
      %11 = sbr.rel (0) target = $region5
    $region4: #{tpu_custom_call.1} parent=1 // pred_region
      %s13 = ssub.s32 128, 128
      %14 = vsyncadd [#allocation3], %s13
      %s16 = sshll.u32 [#allocation2], 4
      %s17 = int_to_ptr.vmem [resolvable:$true] %s16
      %19 = dma.hbm_to_vmem [thread:$0]  %s0, 128, %s17, [#allocation3]
    $region5: #{tpu_custom_call.1} parent=1 // pred_fallthru
      _
    // Predicated region
    $region6: #{tpu_custom_call.1} parent=1 // pred_check
      _
    $region7: #{tpu_custom_call.1} parent=1 // pred_check_branch
      %21 = sbr.rel (0) target = $region9
    $region8: #{tpu_custom_call.1} parent=1 // pred_region
      %s23 = ssub.s32 128, 128
      %24 = vsyncadd [#allocation6], %s23
      %s26 = sshll.u32 [#allocation5], 4
      %s27 = int_to_ptr.vmem [resolvable:$true] %s26
      %29 = dma.hbm_to_vmem [thread:$0]  %s1, 128, %s27, [#allocation6]
    $region9: #{tpu_custom_call.1} parent=1 // pred_fallthru
      _
    // Predicated region
    $region10: #{tpu_custom_call.1} parent=1 // pred_check
      _
    $region11: #{tpu_custom_call.1} parent=1 // pred_check_branch
      %31 = sbr.rel (0) target = $region13
    $region12: #{tpu_custom_call.1} parent=1 // pred_region
      %32 = dma.done [#allocation3], 128
    $region13: #{tpu_custom_call.1} parent=1 // pred_fallthru
      _
    // Predicated region
    $region14: #{tpu_custom_call.1} parent=1 // pred_check
      _
    $region15: #{tpu_custom_call.1} parent=1 // pred_check_branch
      %34 = sbr.rel (0) target = $region17
    $region16: #{tpu_custom_call.1} parent=1 // pred_region
      %35 = dma.done [#allocation6], 128
    $region17: #{tpu_custom_call.1} parent=1 // pred_fallthru
      _
    %v36 = vld [vmem:[#allocation2] sm:$0xff]
    %v37 = vld [vmem:[#allocation5] sm:$0xff]
    %v38 = vsub.f32 %v36, %v37
    %v39 = vand.u32 2147483647, %v38
    %40 = vmax.xlane.f32.xlu0 %v39
    %v41 = vpop.xlane.xlu0 %40
    %v42 = vrot.slane %v41, 4
    %v43 = vmax.f32 %v41, %v42
    %v44 = vrot.slane %v43, 2
    %v45 = vmax.f32 %v43, %v44
    %v46 = vrot.slane %v45, 1
    %v47 = vmax.f32 %v45, %v46
    %s48 = vtos %v47
    %s49 = smul.f32 %s48, 2.0
    %v50 = vstv %s49
    %v51 = vrcp.pop %v50
    %s52 = vtos %v51
    %v53 = vstv %s52
    %v54 = vmul.f32 %v38, %v53
    %v55 = vadd.f32 %v54, 0.5
    %56 = vst [vmem:[#allocation7] sm:$0xff] %v55
    // Predicated region
    $region18: #{tpu_custom_call.1} parent=1 // pred_check
      _
    $region19: #{tpu_custom_call.1} parent=1 // pred_check_branch
      %58 = sbr.rel (0) target = $region21
    $region20: #{tpu_custom_call.1} parent=1 // pred_region
      %s60 = ssub.s32 128, 128
      %61 = vsyncadd [#allocation4], %s60
      %s63 = sshll.u32 [#allocation7], 4
      %s64 = int_to_ptr.vmem [resolvable:$true] %s63
      %66 = dma.vmem_to_hbm [thread:$0]  %s64, 128, %s2, [#allocation4]
    $region21: #{tpu_custom_call.1} parent=1 // pred_fallthru
      _
    // Predicated region
    $region22: #{tpu_custom_call.1} parent=1 // pred_check
      _
    $region23: #{tpu_custom_call.1} parent=1 // pred_check_branch
      %68 = sbr.rel (0) target = $region25
    $region24: #{tpu_custom_call.1} parent=1 // pred_region
      %69 = dma.done [#allocation4], 128
    $region25: #{tpu_custom_call.1} parent=1 // pred_fallthru
      _
    %70 = vsyncpa [#allocation3], 1
    %71 = vsyncpa [#allocation6], 1
    %72 = vsyncpa [#allocation4], 1

</llo_original>
